<compile_context>
chip_gen: v6e
topology: v6e:2x2x1
jax: 0.10.0
libtpu: 0.0.40
codegen_flags: <defaults>
</compile_context>

<pallas_src>
import functools

import jax
import jax.numpy as jnp
from jax.experimental import pallas as pl
from jax.experimental.pallas import tpu as pltpu


# ----------------------------------------------------------------------------- kernel
def dynamics_kernel(s_ref, a_ref, w1s_ref, w1a_ref, b1_ref,
                    w2_ref, b2_ref, w3_ref, b3_ref, out_ref):
    s = s_ref[...]                                   # [TB, E]
    a = a_ref[...]                                   # [TB, 1]

    # layer 1: state part on the MXU, action rank-1 term + bias on the VPU
    h1 = jnp.dot(s, w1s_ref[...], preferred_element_type=jnp.float32)
    h1 = h1 + a * w1a_ref[...] + b1_ref[...]         # [TB, Epad]
    h1 = jnp.maximum(h1, 0.0)

    # layer 2 (fc1) + ReLU
    h2 = jnp.dot(h1, w2_ref[...], preferred_element_type=jnp.float32)
    h2 = jnp.maximum(h2 + b2_ref[...], 0.0)          # [TB, Epad]

    # layer 3 (fc2), no activation
    out = jnp.dot(h2, w3_ref[...], preferred_element_type=jnp.float32)
    out_ref[...] = (out + b3_ref[...]).astype(out_ref.dtype)


# ----------------------------------------------------------------------------- wrapper
def _pad_to(x, shape):
    pads = [(0, t - s) for s, t in zip(x.shape, shape)]
    return jnp.pad(x, pads)


@functools.partial(jax.jit, static_argnames=("tb",))
def dynamics_forward(state, action, params, *, tb=128):
    """state: [B, E] f32, action: [B, 1] f32; returns [B, E] f32."""
    w1, b1, w2, b2, w3, b3 = params
    B, E = state.shape
    Epad = max(128, pl.cdiv(E, 128) * 128)           # lane-dense feature width
    TB = tb
    Bpad = pl.cdiv(B, TB) * TB

    # Split state_head weight into state part + action rank-1 part, pad out-dims.
    w1s = _pad_to(w1[:E, :], (E, Epad))              # [E,    Epad]
    w1a = _pad_to(w1[E:, :], (1, Epad))              # [1,    Epad]
    b1p = _pad_to(b1, (1, Epad))
    w2p = _pad_to(w2, (Epad, Epad))                  # zero rows/cols are inert
    b2p = _pad_to(b2, (1, Epad))
    w3p = _pad_to(w3, (Epad, Epad))
    b3p = _pad_to(b3, (1, Epad))

    # Pad batch to a multiple of the batch tile.
    s_p = _pad_to(state, (Bpad, E))
    a_p = _pad_to(action, (Bpad, 1))

    grid = (Bpad // TB,)
    batch_spec = lambda w: pl.BlockSpec((TB, w), lambda i: (i, 0))
    const_spec = lambda shape: pl.BlockSpec(shape, lambda i: (0, 0))

    flops = 2 * Bpad * (E * Epad + 2 * Epad * Epad)
    bytes_accessed = 4 * (Bpad * (E + 1 + Epad)        # state + action + out
                          + E * Epad + 2 * Epad * Epad  # weights
                          + 4 * Epad)                   # w1a + biases

    out = pl.pallas_call(
        dynamics_kernel,
        out_shape=jax.ShapeDtypeStruct((Bpad, Epad), jnp.float32),
        grid=grid,
        in_specs=[
            batch_spec(E),                # state  [TB, E]
            batch_spec(1),                # action [TB, 1]
            const_spec((E, Epad)),        # W1_state (VMEM-resident across grid)
            const_spec((1, Epad)),        # w1_act
            const_spec((1, Epad)),        # b1
            const_spec((Epad, Epad)),     # W2
            const_spec((1, Epad)),        # b2
            const_spec((Epad, Epad)),     # W3
            const_spec((1, Epad)),        # b3
        ],
        out_specs=batch_spec(Epad),
        compiler_params=pltpu.CompilerParams(
            dimension_semantics=("parallel",)),
        cost_estimate=pl.CostEstimate(
            flops=flops, transcendentals=0, bytes_accessed=bytes_accessed),
    )(s_p, a_p, w1s, w1a, b1p, w2p, b2p, w3p, b3p)

    return out[:B, :E]


# ----------------------------------------------------------------------------- params / reference
def init_params(key, encoded_state_size):
    """Deterministic init matching nn.Linear shapes (weights stored [in, out])."""
    E = encoded_state_size
    ks = jax.random.split(key, 6)

    def lin(kw, kb, fan_in, fan_out):
        bound = 1.0 / jnp.sqrt(float(fan_in))
        w = jax.random.uniform(kw, (fan_in, fan_out), jnp.float32, -bound, bound)
        b = jax.random.uniform(kb, (1, fan_out), jnp.float32, -bound, bound)
        return w, b

    w1, b1 = lin(ks[0], ks[1], E + 1, E)   # state_head: Linear(E+1, E)
    w2, b2 = lin(ks[2], ks[3], E, E)       # fc1:        Linear(E, E)
    w3, b3 = lin(ks[4], ks[5], E, E)       # fc2:        Linear(E, E)
    return (w1, b1, w2, b2, w3, b3)


def reference_forward(state, action, params):
    """Pure-JAX reference matching the PyTorch module."""
    w1, b1, w2, b2, w3, b3 = params
    x = jnp.concatenate([state, action], axis=1)
    h1 = jnp.maximum(x @ w1 + b1, 0.0)
    h2 = jnp.maximum(h1 @ w2 + b2, 0.0)
    return h2 @ w3 + b3


# ----------------------------------------------------------------------------- demo
if __name__ == "__main__":
    B = 256                   # batch (tiled by TB=128 over the grid)
    E = 32                    # encoded_state_size

    key = jax.random.PRNGKey(0)
    k_state, k_action, k_params = jax.random.split(key, 3)

    state = jax.random.normal(k_state, (B, E), jnp.float32)
    action = jax.random.normal(k_action, (B, 1), jnp.float32)
    params = init_params(k_params, E)

    out = dynamics_forward(state, action, params)
    out = jax.block_until_ready(out)

    ref = reference_forward(state, action, params)
    assert out.shape == (B, E)
    assert jnp.allclose(out, ref, atol=1e-4, rtol=1e-4), "mismatch vs reference"

    print("KERNEL_OK")
</pallas_src>

<mosaic_0001>
module attributes {stable_mosaic.version = 11 : i64} {
  func.func @dynamics_kernel(%arg0: i32, %arg1: memref<128x32xf32, #tpu.memory_space<vmem>>, %arg2: memref<128x1xf32, #tpu.memory_space<vmem>>, %arg3: memref<32x128xf32, #tpu.memory_space<vmem>>, %arg4: memref<1x128xf32, #tpu.memory_space<vmem>>, %arg5: memref<1x128xf32, #tpu.memory_space<vmem>>, %arg6: memref<128x128xf32, #tpu.memory_space<vmem>>, %arg7: memref<1x128xf32, #tpu.memory_space<vmem>>, %arg8: memref<128x128xf32, #tpu.memory_space<vmem>>, %arg9: memref<1x128xf32, #tpu.memory_space<vmem>>, %arg10: memref<128x128xf32, #tpu.memory_space<vmem>>) attributes {dimension_semantics = [#tpu.dimension_semantics<parallel>], iteration_bounds = array<i64: 2>, scalar_prefetch = 0 : i64, scratch_operands = 0 : i64, tpu.core_type = #tpu.core_type<tc>, window_params = [{transform_indices = @transform_0, window_bounds = array<i64: 128, 32>}, {transform_indices = @transform_1, window_bounds = array<i64: 128, 1>}, {pipeline_mode = #tpu.pipeline_mode<synchronous>, transform_indices = @transform_2, window_bounds = array<i64: 32, 128>}, {pipeline_mode = #tpu.pipeline_mode<synchronous>, transform_indices = @transform_3, window_bounds = array<i64: 1, 128>}, {pipeline_mode = #tpu.pipeline_mode<synchronous>, transform_indices = @transform_4, window_bounds = array<i64: 1, 128>}, {pipeline_mode = #tpu.pipeline_mode<synchronous>, transform_indices = @transform_5, window_bounds = array<i64: 128, 128>}, {pipeline_mode = #tpu.pipeline_mode<synchronous>, transform_indices = @transform_6, window_bounds = array<i64: 1, 128>}, {pipeline_mode = #tpu.pipeline_mode<synchronous>, transform_indices = @transform_7, window_bounds = array<i64: 128, 128>}, {pipeline_mode = #tpu.pipeline_mode<synchronous>, transform_indices = @transform_8, window_bounds = array<i64: 1, 128>}, {transform_indices = @transform_9, window_bounds = array<i64: 128, 128>}]} {
    %c0 = arith.constant 0 : index
    %c0_0 = arith.constant 0 : index
    %0 = vector.load %arg1[%c0, %c0_0] : memref<128x32xf32, #tpu.memory_space<vmem>>, vector<128x32xf32>
    %c0_1 = arith.constant 0 : index
    %c0_2 = arith.constant 0 : index
    %1 = vector.load %arg2[%c0_1, %c0_2] : memref<128x1xf32, #tpu.memory_space<vmem>>, vector<128x1xf32>
    %c0_3 = arith.constant 0 : index
    %c0_4 = arith.constant 0 : index
    %2 = vector.load %arg3[%c0_3, %c0_4] : memref<32x128xf32, #tpu.memory_space<vmem>>, vector<32x128xf32>
    %cst = arith.constant dense<0.000000e+00> : vector<128x128xf32>
    %3 = tpu.matmul %0, %2, %cst {dimension_numbers = #tpu.dot_dimension_numbers<[1], [0], [0], [1], [0, 0, 1, 1], [], []>} : vector<128x32xf32>, vector<32x128xf32>, vector<128x128xf32> -> vector<128x128xf32>
    %c0_5 = arith.constant 0 : index
    %c0_6 = arith.constant 0 : index
    %4 = vector.load %arg4[%c0_5, %c0_6] : memref<1x128xf32, #tpu.memory_space<vmem>>, vector<1x128xf32>
    %5 = vector.broadcast %1 : vector<128x1xf32> to vector<128x128xf32>
    %6 = vector.broadcast %4 : vector<1x128xf32> to vector<128x128xf32>
    %7 = arith.mulf %5, %6 : vector<128x128xf32>
    %8 = arith.addf %3, %7 : vector<128x128xf32>
    %c0_7 = arith.constant 0 : index
    %c0_8 = arith.constant 0 : index
    %9 = vector.load %arg5[%c0_7, %c0_8] : memref<1x128xf32, #tpu.memory_space<vmem>>, vector<1x128xf32>
    %10 = vector.broadcast %9 : vector<1x128xf32> to vector<128x128xf32>
    %11 = arith.addf %8, %10 : vector<128x128xf32>
    %cst_9 = arith.constant 0.000000e+00 : f32
    %12 = vector.broadcast %cst_9 : f32 to vector<128x128xf32>
    %13 = arith.maximumf %11, %12 : vector<128x128xf32>
    %c0_10 = arith.constant 0 : index
    %c0_11 = arith.constant 0 : index
    %14 = vector.load %arg6[%c0_10, %c0_11] : memref<128x128xf32, #tpu.memory_space<vmem>>, vector<128x128xf32>
    %cst_12 = arith.constant dense<0.000000e+00> : vector<128x128xf32>
    %15 = tpu.matmul %13, %14, %cst_12 {dimension_numbers = #tpu.dot_dimension_numbers<[1], [0], [0], [1], [0, 0, 1, 1], [], []>} : vector<128x128xf32>, vector<128x128xf32>, vector<128x128xf32> -> vector<128x128xf32>
    %c0_13 = arith.constant 0 : index
    %c0_14 = arith.constant 0 : index
    %16 = vector.load %arg7[%c0_13, %c0_14] : memref<1x128xf32, #tpu.memory_space<vmem>>, vector<1x128xf32>
    %17 = vector.broadcast %16 : vector<1x128xf32> to vector<128x128xf32>
    %18 = arith.addf %15, %17 : vector<128x128xf32>
    %cst_15 = arith.constant 0.000000e+00 : f32
    %19 = vector.broadcast %cst_15 : f32 to vector<128x128xf32>
    %20 = arith.maximumf %18, %19 : vector<128x128xf32>
    %c0_16 = arith.constant 0 : index
    %c0_17 = arith.constant 0 : index
    %21 = vector.load %arg8[%c0_16, %c0_17] : memref<128x128xf32, #tpu.memory_space<vmem>>, vector<128x128xf32>
    %cst_18 = arith.constant dense<0.000000e+00> : vector<128x128xf32>
    %22 = tpu.matmul %20, %21, %cst_18 {dimension_numbers = #tpu.dot_dimension_numbers<[1], [0], [0], [1], [0, 0, 1, 1], [], []>} : vector<128x128xf32>, vector<128x128xf32>, vector<128x128xf32> -> vector<128x128xf32>
    %c0_19 = arith.constant 0 : index
    %c0_20 = arith.constant 0 : index
    %23 = vector.load %arg9[%c0_19, %c0_20] : memref<1x128xf32, #tpu.memory_space<vmem>>, vector<1x128xf32>
    %24 = vector.broadcast %23 : vector<1x128xf32> to vector<128x128xf32>
    %25 = arith.addf %22, %24 : vector<128x128xf32>
    %c0_21 = arith.constant 0 : index
    %c0_22 = arith.constant 0 : index
    %26 = vector.load %arg10[%c0_21, %c0_22] : memref<128x128xf32, #tpu.memory_space<vmem>>, vector<128x128xf32>
    tpu.vector_store %arg10[%c0_21, %c0_22], %25 {strides = array<i32>} : memref<128x128xf32, #tpu.memory_space<vmem>>, vector<128x128xf32>,
    return
  }
  func.func @transform_0(%arg0: i32) -> (i32, i32) {
    %c0_i32 = arith.constant 0 : i32
    %c0_i32_0 = arith.constant 0 : i32
    return %arg0, %c0_i32 : i32, i32
  }
  func.func @transform_1(%arg0: i32) -> (i32, i32) {
    %c0_i32 = arith.constant 0 : i32
    %c0_i32_0 = arith.constant 0 : i32
    return %arg0, %c0_i32 : i32, i32
  }
  func.func @transform_2(%arg0: i32) -> (i32, i32) {
    %c0_i32 = arith.constant 0 : i32
    %c0_i32_0 = arith.constant 0 : i32
    %c0_i32_1 = arith.constant 0 : i32
    return %c0_i32, %c0_i32_0 : i32, i32
  }
  func.func @transform_3(%arg0: i32) -> (i32, i32) {
    %c0_i32 = arith.constant 0 : i32
    %c0_i32_0 = arith.constant 0 : i32
    %c0_i32_1 = arith.constant 0 : i32
    return %c0_i32, %c0_i32_0 : i32, i32
  }
  func.func @transform_4(%arg0: i32) -> (i32, i32) {
    %c0_i32 = arith.constant 0 : i32
    %c0_i32_0 = arith.constant 0 : i32
    %c0_i32_1 = arith.constant 0 : i32
    return %c0_i32, %c0_i32_0 : i32, i32
  }
  func.func @transform_5(%arg0: i32) -> (i32, i32) {
    %c0_i32 = arith.constant 0 : i32
    %c0_i32_0 = arith.constant 0 : i32
    %c0_i32_1 = arith.constant 0 : i32
    return %c0_i32, %c0_i32_0 : i32, i32
  }
  func.func @transform_6(%arg0: i32) -> (i32, i32) {
    %c0_i32 = arith.constant 0 : i32
    %c0_i32_0 = arith.constant 0 : i32
    %c0_i32_1 = arith.constant 0 : i32
    return %c0_i32, %c0_i32_0 : i32, i32
  }
  func.func @transform_7(%arg0: i32) -> (i32, i32) {
    %c0_i32 = arith.constant 0 : i32
    %c0_i32_0 = arith.constant 0 : i32
    %c0_i32_1 = arith.constant 0 : i32
    return %c0_i32, %c0_i32_0 : i32, i32
  }
  func.func @transform_8(%arg0: i32) -> (i32, i32) {
    %c0_i32 = arith.constant 0 : i32
    %c0_i32_0 = arith.constant 0 : i32
    %c0_i32_1 = arith.constant 0 : i32
    return %c0_i32, %c0_i32_0 : i32, i32
  }
  func.func @transform_9(%arg0: i32) -> (i32, i32) {
    %c0_i32 = arith.constant 0 : i32
    %c0_i32_0 = arith.constant 0 : i32
    return %arg0, %c0_i32 : i32, i32
  }
}

</mosaic_0001>

<llo_original>
// kernel: dynamics_forward.1
$region0: #{dynamics_forward.1}
  #allocation0 [shape = 'u32[]', space=smem, size = 0x4, offset = 0x4, fixed_abs, tag = 'smem constant byte address 0x4 - core index']
  #allocation1 [shape = 'u32[144,128]{1,0:T(1,128)}', space=vmem, size = 0x12000, scoped, tag = 'internal scratch']
  %s0 = inlined_call_operand.vmem [shape: f32[256,32], index: 0, kind: input, shape index: {}]
  %s1 = inlined_call_operand.vmem [shape: f32[256,1], index: 1, kind: input, shape index: {}]
  %s2 = inlined_call_operand.vmem [shape: f32[32,128], index: 2, kind: input, shape index: {}]
  %s3 = inlined_call_operand.vmem [shape: f32[1,128], index: 3, kind: input, shape index: {}]
  %s4 = inlined_call_operand.vmem [shape: f32[1,128], index: 4, kind: input, shape index: {}]
  %s5 = inlined_call_operand.vmem [shape: f32[128,128], index: 5, kind: input, shape index: {}]
  %s6 = inlined_call_operand.vmem [shape: f32[1,128], index: 6, kind: input, shape index: {}]
  %s7 = inlined_call_operand.vmem [shape: f32[128,128], index: 7, kind: input, shape index: {}]
  %s8 = inlined_call_operand.vmem [shape: f32[1,128], index: 8, kind: input, shape index: {}]
  %s9 = inlined_call_operand.vmem [shape: f32[256,128], index: 9, kind: output, shape index: {}]
  %s10 = sld [smem:[#allocation0]]
  $region69: #{dynamics_forward.1} parent=0
    _
  %s12 = ssub.s32 1, %s10
  %s13 = scalar_select 0, %s12, %s10
  loop: start=0, step=1, limit=4
  $region2: #{dynamics_forward.1} parent=0 // loop_pre_header
    _
  $region3: #{dynamics_forward.1} parent=0 // loop_header
    %s15 = sphi 0, %s19
    %p16 = scmp.ge.s32.totalorder %s15, 4
    %s25 = sphi 0, %s27
    %s28 = sphi 0, %s25
    %s29 = sphi 0, %s28
    %s45 = sphi 0, %s29
    %s51 = sphi 0, %s53
    %s54 = sphi 0, %s51
    %s55 = sphi 0, %s54
    %s71 = sphi 0, %s55
    %s75 = sphi 0, %s75
    %s77 = sphi 0, %s75
    %s78 = sphi 0, %s77
    %s92 = sphi 0, %s78
    %s96 = sphi 0, %s96
    %s98 = sphi 0, %s96
    %s99 = sphi 0, %s98
    %s113 = sphi 0, %s99
    %s117 = sphi 0, %s117
    %s119 = sphi 0, %s117
    %s120 = sphi 0, %s119
    %s134 = sphi 0, %s120
    %s138 = sphi 0, %s138
    %s140 = sphi 0, %s138
    %s141 = sphi 0, %s140
    %s155 = sphi 0, %s141
    %s159 = sphi 0, %s159
    %s161 = sphi 0, %s159
    %s162 = sphi 0, %s161
    %s176 = sphi 0, %s162
    %s180 = sphi 0, %s180
    %s182 = sphi 0, %s180
    %s183 = sphi 0, %s182
    %s197 = sphi 0, %s183
    %s201 = sphi 0, %s201
    %s203 = sphi 0, %s201
    %s204 = sphi 0, %s203
    %s218 = sphi 0, %s204
    %s224 = sphi 0, %s226
    %s227 = sphi 0, %s224
    %s228 = sphi 0, %s227
    %s244 = sphi 0, %s228
  $region4: #{dynamics_forward.1} parent=0 // loop_header_branch
    %18 = sbr.rel (%p16) target = $region8
  $region5: #{dynamics_forward.1} parent=0 // loop_body
    %s20 = ssub.s32 %s15, 1
    %s21 = ssub.s32 %s15, 2
    %s22 = sadd.s32 %s15, 1
    %s23 = ssub.s32 %s15, %s22
    %p24 = scmp.eq.s32.totalorder %s23, 0
    %s26 = sadd.s32 %s25, 1
    %s27 = scalar_select %p24, %s25, %s26
    %p30 = pneg %p24
    %p31 = scmp.eq.s32.totalorder %s15, 1
    %p32 = por %p30, %p31
    %p33 = scmp.ne.s32.totalorder %s25, %s28
    %p34 = scmp.eq.s32.totalorder %s15, 0
    %p35 = por %p33, %p34
    %p36 = scmp.ne.s32.totalorder %s25, %s28
    %p37 = scmp.eq.s32.totalorder %s20, 1
    %p38 = por %p36, %p37
    %p39 = scmp.ne.s32.totalorder %s28, %s29
    %p40 = scmp.eq.s32.totalorder %s20, 0
    %p41 = por %p39, %p40
    %p42 = scmp.ne.s32.totalorder %s28, %s29
    %p43 = scmp.eq.s32.totalorder %s21, 1
    %p44 = por %p42, %p43
    %p46 = scmp.ne.s32.totalorder %s29, %s45
    %p47 = scmp.eq.s32.totalorder %s21, 0
    %p48 = por %p46, %p47
    %s49 = ssub.s32 %s15, %s22
    %p50 = scmp.eq.s32.totalorder %s49, 0
    %s52 = sadd.s32 %s51, 1
    %s53 = scalar_select %p50, %s51, %s52
    %p56 = pneg %p50
    %p57 = scmp.eq.s32.totalorder %s15, 1
    %p58 = por %p56, %p57
    %p59 = scmp.ne.s32.totalorder %s51, %s54
    %p60 = scmp.eq.s32.totalorder %s15, 0
    %p61 = por %p59, %p60
    %p62 = scmp.ne.s32.totalorder %s51, %s54
    %p63 = scmp.eq.s32.totalorder %s20, 1
    %p64 = por %p62, %p63
    %p65 = scmp.ne.s32.totalorder %s54, %s55
    %p66 = scmp.eq.s32.totalorder %s20, 0
    %p67 = por %p65, %p66
    %p68 = scmp.ne.s32.totalorder %s54, %s55
    %p69 = scmp.eq.s32.totalorder %s21, 1
    %p70 = por %p68, %p69
    %p72 = scmp.ne.s32.totalorder %s55, %s71
    %p73 = scmp.eq.s32.totalorder %s21, 0
    %p74 = por %p72, %p73
    %s76 = sadd.s32 %s75, 1
    %p79 = scmp.eq.s32.totalorder %s15, 1
    %p80 = scmp.ne.s32.totalorder %s75, %s77
    %p81 = scmp.eq.s32.totalorder %s15, 0
    %p82 = por %p80, %p81
    %p83 = scmp.ne.s32.totalorder %s75, %s77
    %p84 = scmp.eq.s32.totalorder %s20, 1
    %p85 = por %p83, %p84
    %p86 = scmp.ne.s32.totalorder %s77, %s78
    %p87 = scmp.eq.s32.totalorder %s20, 0
    %p88 = por %p86, %p87
    %p89 = scmp.ne.s32.totalorder %s77, %s78
    %p90 = scmp.eq.s32.totalorder %s21, 1
    %p91 = por %p89, %p90
    %p93 = scmp.ne.s32.totalorder %s78, %s92
    %p94 = scmp.eq.s32.totalorder %s21, 0
    %p95 = por %p93, %p94
    %s97 = sadd.s32 %s96, 1
    %p100 = scmp.eq.s32.totalorder %s15, 1
    %p101 = scmp.ne.s32.totalorder %s96, %s98
    %p102 = scmp.eq.s32.totalorder %s15, 0
    %p103 = por %p101, %p102
    %p104 = scmp.ne.s32.totalorder %s96, %s98
    %p105 = scmp.eq.s32.totalorder %s20, 1
    %p106 = por %p104, %p105
    %p107 = scmp.ne.s32.totalorder %s98, %s99
    %p108 = scmp.eq.s32.totalorder %s20, 0
    %p109 = por %p107, %p108
    %p110 = scmp.ne.s32.totalorder %s98, %s99
    %p111 = scmp.eq.s32.totalorder %s21, 1
    %p112 = por %p110, %p111
    %p114 = scmp.ne.s32.totalorder %s99, %s113
    %p115 = scmp.eq.s32.totalorder %s21, 0
    %p116 = por %p114, %p115
    %s118 = sadd.s32 %s117, 1
    %p121 = scmp.eq.s32.totalorder %s15, 1
    %p122 = scmp.ne.s32.totalorder %s117, %s119
    %p123 = scmp.eq.s32.totalorder %s15, 0
    %p124 = por %p122, %p123
    %p125 = scmp.ne.s32.totalorder %s117, %s119
    %p126 = scmp.eq.s32.totalorder %s20, 1
    %p127 = por %p125, %p126
    %p128 = scmp.ne.s32.totalorder %s119, %s120
    %p129 = scmp.eq.s32.totalorder %s20, 0
    %p130 = por %p128, %p129
    %p131 = scmp.ne.s32.totalorder %s119, %s120
    %p132 = scmp.eq.s32.totalorder %s21, 1
    %p133 = por %p131, %p132
    %p135 = scmp.ne.s32.totalorder %s120, %s134
    %p136 = scmp.eq.s32.totalorder %s21, 0
    %p137 = por %p135, %p136
    %s139 = sadd.s32 %s138, 1
    %p142 = scmp.eq.s32.totalorder %s15, 1
    %p143 = scmp.ne.s32.totalorder %s138, %s140
    %p144 = scmp.eq.s32.totalorder %s15, 0
    %p145 = por %p143, %p144
    %p146 = scmp.ne.s32.totalorder %s138, %s140
    %p147 = scmp.eq.s32.totalorder %s20, 1
    %p148 = por %p146, %p147
    %p149 = scmp.ne.s32.totalorder %s140, %s141
    %p150 = scmp.eq.s32.totalorder %s20, 0
    %p151 = por %p149, %p150
    %p152 = scmp.ne.s32.totalorder %s140, %s141
    %p153 = scmp.eq.s32.totalorder %s21, 1
    %p154 = por %p152, %p153
    %p156 = scmp.ne.s32.totalorder %s141, %s155
    %p157 = scmp.eq.s32.totalorder %s21, 0
    %p158 = por %p156, %p157
    %s160 = sadd.s32 %s159, 1
    %p163 = scmp.eq.s32.totalorder %s15, 1
    %p164 = scmp.ne.s32.totalorder %s159, %s161
    %p165 = scmp.eq.s32.totalorder %s15, 0
    %p166 = por %p164, %p165
    %p167 = scmp.ne.s32.totalorder %s159, %s161
    %p168 = scmp.eq.s32.totalorder %s20, 1
    %p169 = por %p167, %p168
    %p170 = scmp.ne.s32.totalorder %s161, %s162
    %p171 = scmp.eq.s32.totalorder %s20, 0
    %p172 = por %p170, %p171
    %p173 = scmp.ne.s32.totalorder %s161, %s162
    %p174 = scmp.eq.s32.totalorder %s21, 1
    %p175 = por %p173, %p174
    %p177 = scmp.ne.s32.totalorder %s162, %s176
    %p178 = scmp.eq.s32.totalorder %s21, 0
    %p179 = por %p177, %p178
    %s181 = sadd.s32 %s180, 1
    %p184 = scmp.eq.s32.totalorder %s15, 1
    %p185 = scmp.ne.s32.totalorder %s180, %s182
    %p186 = scmp.eq.s32.totalorder %s15, 0
    %p187 = por %p185, %p186
    %p188 = scmp.ne.s32.totalorder %s180, %s182
    %p189 = scmp.eq.s32.totalorder %s20, 1
    %p190 = por %p188, %p189
    %p191 = scmp.ne.s32.totalorder %s182, %s183
    %p192 = scmp.eq.s32.totalorder %s20, 0
    %p193 = por %p191, %p192
    %p194 = scmp.ne.s32.totalorder %s182, %s183
    %p195 = scmp.eq.s32.totalorder %s21, 1
    %p196 = por %p194, %p195
    %p198 = scmp.ne.s32.totalorder %s183, %s197
    %p199 = scmp.eq.s32.totalorder %s21, 0
    %p200 = por %p198, %p199
    %s202 = sadd.s32 %s201, 1
    %p205 = scmp.eq.s32.totalorder %s15, 1
    %p206 = scmp.ne.s32.totalorder %s201, %s203
    %p207 = scmp.eq.s32.totalorder %s15, 0
    %p208 = por %p206, %p207
    %p209 = scmp.ne.s32.totalorder %s201, %s203
    %p210 = scmp.eq.s32.totalorder %s20, 1
    %p211 = por %p209, %p210
    %p212 = scmp.ne.s32.totalorder %s203, %s204
    %p213 = scmp.eq.s32.totalorder %s20, 0
    %p214 = por %p212, %p213
    %p215 = scmp.ne.s32.totalorder %s203, %s204
    %p216 = scmp.eq.s32.totalorder %s21, 1
    %p217 = por %p215, %p216
    %p219 = scmp.ne.s32.totalorder %s204, %s218
    %p220 = scmp.eq.s32.totalorder %s21, 0
    %p221 = por %p219, %p220
    %s222 = ssub.s32 %s15, %s22
    %p223 = scmp.eq.s32.totalorder %s222, 0
    %s225 = sadd.s32 %s224, 1
    %s226 = scalar_select %p223, %s224, %s225
    %p229 = pneg %p223
    %p230 = scmp.eq.s32.totalorder %s15, 1
    %p231 = por %p229, %p230
    %p232 = scmp.ne.s32.totalorder %s224, %s227
    %p233 = scmp.eq.s32.totalorder %s15, 0
    %p234 = por %p232, %p233
    %p235 = scmp.ne.s32.totalorder %s224, %s227
    %p236 = scmp.eq.s32.totalorder %s20, 1
    %p237 = por %p235, %p236
    %p238 = scmp.ne.s32.totalorder %s227, %s228
    %p239 = scmp.eq.s32.totalorder %s20, 0
    %p240 = por %p238, %p239
    %p241 = scmp.ne.s32.totalorder %s227, %s228
    %p242 = scmp.eq.s32.totalorder %s21, 1
    %p243 = por %p241, %p242
    %p245 = scmp.ne.s32.totalorder %s228, %s244
    %p246 = scmp.eq.s32.totalorder %s21, 0
    %p247 = por %p245, %p246
    %p248 = scmp.le.s32.totalorder 1, %s15
    %p249 = scmp.lt.s32.totalorder %s15, 3
    %p250 = pnand %p248, %p249
    %p251 = pneg %p250
    // Predicated region
    $region9: #{dynamics_forward.1} parent=5 // pred_check
      _
    $region10: #{dynamics_forward.1} parent=5 // pred_check_branch
      %253 = sbr.rel (%p250) target = $region12
    $region11: #{dynamics_forward.1} parent=5 // pred_region
      %s254 = ssub.s32 %s15, 1
      // Predicated region
      $region13: #{dynamics_forward.1} parent=11 // pred_check
        %p255 = pneg %p88
      $region14: #{dynamics_forward.1} parent=11 // pred_check_branch
        %257 = sbr.rel (%p255) target = $region16
      $region15: #{dynamics_forward.1} parent=11 // pred_region
        _
      $region16: #{dynamics_forward.1} parent=11 // pred_fallthru
        _
      // Predicated region
      $region17: #{dynamics_forward.1} parent=11 // pred_check
        %p258 = pneg %p109
      $region18: #{dynamics_forward.1} parent=11 // pred_check_branch
        %260 = sbr.rel (%p258) target = $region20
      $region19: #{dynamics_forward.1} parent=11 // pred_region
        _
      $region20: #{dynamics_forward.1} parent=11 // pred_fallthru
        _
      // Predicated region
      $region21: #{dynamics_forward.1} parent=11 // pred_check
        %p261 = pneg %p130
      $region22: #{dynamics_forward.1} parent=11 // pred_check_branch
        %263 = sbr.rel (%p261) target = $region24
      $region23: #{dynamics_forward.1} parent=11 // pred_region
        _
      $region24: #{dynamics_forward.1} parent=11 // pred_fallthru
        _
      // Predicated region
      $region25: #{dynamics_forward.1} parent=11 // pred_check
        %p264 = pneg %p151
      $region26: #{dynamics_forward.1} parent=11 // pred_check_branch
        %266 = sbr.rel (%p264) target = $region28
      $region27: #{dynamics_forward.1} parent=11 // pred_region
        _
      $region28: #{dynamics_forward.1} parent=11 // pred_fallthru
        _
      // Predicated region
      $region29: #{dynamics_forward.1} parent=11 // pred_check
        %p267 = pneg %p172
      $region30: #{dynamics_forward.1} parent=11 // pred_check_branch
        %269 = sbr.rel (%p267) target = $region32
      $region31: #{dynamics_forward.1} parent=11 // pred_region
        _
      $region32: #{dynamics_forward.1} parent=11 // pred_fallthru
        _
      // Predicated region
      $region33: #{dynamics_forward.1} parent=11 // pred_check
        %p270 = pneg %p193
      $region34: #{dynamics_forward.1} parent=11 // pred_check_branch
        %272 = sbr.rel (%p270) target = $region36
      $region35: #{dynamics_forward.1} parent=11 // pred_region
        _
      $region36: #{dynamics_forward.1} parent=11 // pred_fallthru
        _
      // Predicated region
      $region37: #{dynamics_forward.1} parent=11 // pred_check
        %p273 = pneg %p214
      $region38: #{dynamics_forward.1} parent=11 // pred_check_branch
        %275 = sbr.rel (%p273) target = $region40
      $region39: #{dynamics_forward.1} parent=11 // pred_region
        _
      $region40: #{dynamics_forward.1} parent=11 // pred_fallthru
        _
    $region12: #{dynamics_forward.1} parent=5 // pred_fallthru
      _
    %p276 = scmp.lt.s32.totalorder %s15, 2
    // Predicated region
    $region41: #{dynamics_forward.1} parent=5 // pred_check
      %p277 = pneg %p276
    $region42: #{dynamics_forward.1} parent=5 // pred_check_branch
      %279 = sbr.rel (%p277) target = $region44
    $region43: #{dynamics_forward.1} parent=5 // pred_region
      // Predicated region
      $region45: #{dynamics_forward.1} parent=43 // pred_check
        %p280 = pneg %p35
      $region46: #{dynamics_forward.1} parent=43 // pred_check_branch
        %282 = sbr.rel (%p280) target = $region48
      $region47: #{dynamics_forward.1} parent=43 // pred_region
        %s283 = smul.u32 16, %s15
        %p284 = scmp.lt.s32.totalorder %s283, 31
        %s285 = scalar_select %p284, %s283, 31
        %s286 = smul.addr %s285, 8
        %s287 = scalar_lea.vmem %s0, %s286
        %s288 = smul.u32 16, %s15
      $region48: #{dynamics_forward.1} parent=43 // pred_fallthru
        _
      // Predicated region
      $region49: #{dynamics_forward.1} parent=43 // pred_check
        %p289 = pneg %p61
      $region50: #{dynamics_forward.1} parent=43 // pred_check_branch
        %291 = sbr.rel (%p289) target = $region52
      $region51: #{dynamics_forward.1} parent=43 // pred_region
        %s292 = smul.u32 16, %s15
        %p293 = scmp.lt.s32.totalorder %s292, 31
        %s294 = scalar_select %p293, %s292, 31
        %s295 = smul.addr %s294, 8
        %s296 = scalar_lea.vmem %s1, %s295
        %s297 = smul.u32 16, %s15
      $region52: #{dynamics_forward.1} parent=43 // pred_fallthru
        _
    $region44: #{dynamics_forward.1} parent=5 // pred_fallthru
      _
    %p298 = scmp.le.s32.totalorder 1, %s15
    %p299 = scmp.lt.s32.totalorder %s15, 3
    %p300 = pnand %p298, %p299
    %p301 = pneg %p300
    // Predicated region
    $region53: #{dynamics_forward.1} parent=5 // pred_check
      _
    $region54: #{dynamics_forward.1} parent=5 // pred_check_branch
      %303 = sbr.rel (%p300) target = $region56
    $region55: #{dynamics_forward.1} parent=5 // pred_region
      %s304 = ssub.s32 %s15, 1
      %s305 = smul.u32 16, %s20
      %p306 = scmp.lt.s32.totalorder %s305, 31
      %s307 = scalar_select %p306, %s305, 31
      %s308 = smul.addr %s307, 8
      %s309 = scalar_lea.vmem %s0, %s308
      %p310 = pneg %p41
      %p311 = pneg %p38
      %s312 = smul.u32 16, %s20
      %p313 = scmp.lt.s32.totalorder %s312, 31
      %s314 = scalar_select %p313, %s312, 31
      %s315 = smul.addr %s314, 8
      %s316 = scalar_lea.vmem %s1, %s315
      %p317 = pneg %p67
      %p318 = pneg %p64
      %p319 = pneg %p88
      %p320 = pneg %p85
      %p321 = pneg %p109
      %p322 = pneg %p106
      %p323 = pneg %p130
      %p324 = pneg %p127
      %p325 = pneg %p151
      %p326 = pneg %p148
      %p327 = pneg %p172
      %p328 = pneg %p169
      %p329 = pneg %p193
      %p330 = pneg %p190
      %p331 = pneg %p214
      %p332 = pneg %p211
      %p333 = pneg %p240
      %p334 = pneg %p237
      %s335 = smul.u32 16, %s20
      %p336 = scmp.lt.s32.totalorder %s335, 31
      %s337 = scalar_select %p336, %s335, 31
      %s338 = smul.addr %s337, 8
      %s339 = scalar_lea.vmem %s9, %s338
      %s340 = smul.u32 16, %s20
      %p341 = scmp.lt.s32.totalorder %s340, 31
      %s342 = scalar_select %p341, %s340, 31
      %s343 = smul.addr %s342, 8
      %s344 = scalar_lea.vmem %s0, %s343
      %s345 = smul.u32 16, %s20
      %s346 = smul.u32 16, %s20
      %p347 = scmp.lt.s32.totalorder %s346, 31
      %s348 = scalar_select %p347, %s346, 31
      %s349 = smul.addr %s348, 8
      %s350 = scalar_lea.vmem %s1, %s349
      %s351 = smul.u32 16, %s20
      %s352 = smul.u32 16, %s20
      %p353 = scmp.lt.s32.totalorder %s352, 31
      %s354 = scalar_select %p353, %s352, 31
      %s355 = smul.addr %s354, 8
      %s356 = scalar_lea.vmem %s9, %s355
      %s357 = smul.u32 16, %s20
      %v358 = vld [vmem:[%s344] sm:$0xff]
      %v359 = vld [vmem:[%s344 + $0x8] sm:$0xff]
      %v360 = vld [vmem:[%s344 + $0x10] sm:$0xff]
      %v361 = vld [vmem:[%s344 + $0x18] sm:$0xff]
      %v362 = vld [vmem:[%s344 + $0x20] sm:$0xff]
      %v363 = vld [vmem:[%s344 + $0x28] sm:$0xff]
      %v364 = vld [vmem:[%s344 + $0x30] sm:$0xff]
      %v365 = vld [vmem:[%s344 + $0x38] sm:$0xff]
      %v366 = vld [vmem:[%s344 + $0x40] sm:$0xff]
      %v367 = vld [vmem:[%s344 + $0x48] sm:$0xff]
      %v368 = vld [vmem:[%s344 + $0x50] sm:$0xff]
      %v369 = vld [vmem:[%s344 + $0x58] sm:$0xff]
      %v370 = vld [vmem:[%s344 + $0x60] sm:$0xff]
      %v371 = vld [vmem:[%s344 + $0x68] sm:$0xff]
      %v372 = vld [vmem:[%s344 + $0x70] sm:$0xff]
      %v373 = vld [vmem:[%s344 + $0x78] sm:$0xff]
      %v374 = vld [vmem:[%s350] sm:$0xff]
      %v375 = vld [vmem:[%s350 + $0x8] sm:$0xff]
      %v376 = vld [vmem:[%s350 + $0x10] sm:$0xff]
      %v377 = vld [vmem:[%s350 + $0x18] sm:$0xff]
      %v378 = vld [vmem:[%s350 + $0x20] sm:$0xff]
      %v379 = vld [vmem:[%s350 + $0x28] sm:$0xff]
      %v380 = vld [vmem:[%s350 + $0x30] sm:$0xff]
      %v381 = vld [vmem:[%s350 + $0x38] sm:$0xff]
      %v382 = vld [vmem:[%s350 + $0x40] sm:$0xff]
      %v383 = vld [vmem:[%s350 + $0x48] sm:$0xff]
      %v384 = vld [vmem:[%s350 + $0x50] sm:$0xff]
      %v385 = vld [vmem:[%s350 + $0x58] sm:$0xff]
      %v386 = vld [vmem:[%s350 + $0x60] sm:$0xff]
      %v387 = vld [vmem:[%s350 + $0x68] sm:$0xff]
      %v388 = vld [vmem:[%s350 + $0x70] sm:$0xff]
      %v389 = vld [vmem:[%s350 + $0x78] sm:$0xff]
      %v390 = vld [vmem:[%s2] sm:$0xff]
      %v391 = vld [vmem:[%s2 + $0x8] sm:$0xff]
      %v392 = vld [vmem:[%s2 + $0x10] sm:$0xff]
      %v393 = vld [vmem:[%s2 + $0x18] sm:$0xff]
      %v394 = vld [vmem:[%s3] sm:$0x1]
      %396 = vset.pattern.permute.xlu0 0
      %397 = vperm.xlu0 %396, %v374
      %v398 = vpop.permute.xlu0 %397
      %401 = vset.pattern.permute.xlu0 0
      %402 = vperm.xlu0 %401, %v375
      %v403 = vpop.permute.xlu0 %402
      %406 = vset.pattern.permute.xlu0 0
      %407 = vperm.xlu0 %406, %v376
      %v408 = vpop.permute.xlu0 %407
      %411 = vset.pattern.permute.xlu0 0
      %412 = vperm.xlu0 %411, %v377
      %v413 = vpop.permute.xlu0 %412
      %416 = vset.pattern.permute.xlu0 0
      %417 = vperm.xlu0 %416, %v378
      %v418 = vpop.permute.xlu0 %417
      %421 = vset.pattern.permute.xlu0 0
      %422 = vperm.xlu0 %421, %v379
      %v423 = vpop.permute.xlu0 %422
      %426 = vset.pattern.permute.xlu0 0
      %427 = vperm.xlu0 %426, %v380
      %v428 = vpop.permute.xlu0 %427
      %431 = vset.pattern.permute.xlu0 0
      %432 = vperm.xlu0 %431, %v381
      %v433 = vpop.permute.xlu0 %432
      %436 = vset.pattern.permute.xlu0 0
      %437 = vperm.xlu0 %436, %v382
      %v438 = vpop.permute.xlu0 %437
      %441 = vset.pattern.permute.xlu0 0
      %442 = vperm.xlu0 %441, %v383
      %v443 = vpop.permute.xlu0 %442
      %446 = vset.pattern.permute.xlu0 0
      %447 = vperm.xlu0 %446, %v384
      %v448 = vpop.permute.xlu0 %447
      %451 = vset.pattern.permute.xlu0 0
      %452 = vperm.xlu0 %451, %v385
      %v453 = vpop.permute.xlu0 %452
      %456 = vset.pattern.permute.xlu0 0
      %457 = vperm.xlu0 %456, %v386
      %v458 = vpop.permute.xlu0 %457
      %461 = vset.pattern.permute.xlu0 0
      %462 = vperm.xlu0 %461, %v387
      %v463 = vpop.permute.xlu0 %462
      %466 = vset.pattern.permute.xlu0 0
      %467 = vperm.xlu0 %466, %v388
      %v468 = vpop.permute.xlu0 %467
      %471 = vset.pattern.permute.xlu0 0
      %472 = vperm.xlu0 %471, %v389
      %v473 = vpop.permute.xlu0 %472
      %v476 = vlaneseq
      %v477 = vshrl.u32 %v476, 7
      %v478 = vsub.s32 0, %v477
      %v479 = vrot.slane %v394, %v478
      %v481 = vmul.f32 %v398, %v479
      %v482 = vmul.f32 %v403, %v479
      %v483 = vmul.f32 %v408, %v479
      %v484 = vmul.f32 %v413, %v479
      %v485 = vmul.f32 %v418, %v479
      %v486 = vmul.f32 %v423, %v479
      %v487 = vmul.f32 %v428, %v479
      %v488 = vmul.f32 %v433, %v479
      %v489 = vmul.f32 %v438, %v479
      %v490 = vmul.f32 %v443, %v479
      %v491 = vmul.f32 %v448, %v479
      %v492 = vmul.f32 %v453, %v479
      %v493 = vmul.f32 %v458, %v479
      %v494 = vmul.f32 %v463, %v479
      %v495 = vmul.f32 %v468, %v479
      %v496 = vmul.f32 %v473, %v479
      %vm497 = vcmask 261120
      %v499 = vsel %vm497, %v358, 0
      %v502 = vsel %vm497, %v359, 0
      %v505 = vsel %vm497, %v360, 0
      %v508 = vsel %vm497, %v361, 0
      %v511 = vsel %vm497, %v362, 0
      %v514 = vsel %vm497, %v363, 0
      %v517 = vsel %vm497, %v364, 0
      %v520 = vsel %vm497, %v365, 0
      %v523 = vsel %vm497, %v366, 0
      %v526 = vsel %vm497, %v367, 0
      %v529 = vsel %vm497, %v368, 0
      %v532 = vsel %vm497, %v369, 0
      %v535 = vsel %vm497, %v370, 0
      %v538 = vsel %vm497, %v371, 0
      %v541 = vsel %vm497, %v372, 0
      %v544 = vsel %vm497, %v373, 0
      %546 = vmatprep.subr.mxu0 0.0
      %547 = vmatpush1.msra.mxu0 0.0
      %548 = vmatprep.subr.mxu0 0.0
      %549 = vmatpush1.msra.mxu0 0.0
      %550 = vmatprep.subr.mxu0 0.0
      %551 = vmatpush1.msra.mxu0 0.0
      %552 = vmatprep.subr.mxu0 0.0
      %553 = vmatpush1.msra.mxu0 0.0
      %554 = vmatprep.subr.mxu0 0.0
      %555 = vmatpush1.msra.mxu0 0.0
      %556 = vmatprep.subr.mxu0 0.0
      %557 = vmatpush1.msra.mxu0 0.0
      %558 = vmatprep.subr.mxu0 0.0
      %559 = vmatpush1.msra.mxu0 0.0
      %560 = vmatprep.subr.mxu0 0.0
      %561 = vmatpush1.msra.mxu0 0.0
      %562 = vmatprep.subr.mxu0 0.0
      %563 = vmatpush1.msra.mxu0 0.0
      %564 = vmatprep.subr.mxu0 0.0
      %565 = vmatpush1.msra.mxu0 0.0
      %566 = vmatprep.subr.mxu0 0.0
      %567 = vmatpush1.msra.mxu0 0.0
      %568 = vmatprep.subr.mxu0 0.0
      %569 = vmatpush1.msra.mxu0 0.0
      %570 = vmatprep.subr.mxu0 0.0
      %571 = vmatpush1.msra.mxu0 %v393
      %572 = vmatprep.subr.mxu0 0.0
      %573 = vmatpush1.msra.mxu0 %v392
      %574 = vmatprep.subr.mxu0 0.0
      %575 = vmatpush1.msra.mxu0 %v391
      %576 = vmatprep.subr.mxu0 0.0
      %577 = vmatpush1.msra.mxu0 %v390
      %578 = vmatprep.subr.mxu0 0.0
      %579 = vmatpush2.msra.mxu0 0.0
      %580 = vmatprep.subr.mxu0 0.0
      %581 = vmatpush2.msra.mxu0 0.0
      %582 = vmatprep.subr.mxu0 0.0
      %583 = vmatpush2.msra.mxu0 0.0
      %584 = vmatprep.subr.mxu0 0.0
      %585 = vmatpush2.msra.mxu0 0.0
      %586 = vmatprep.subr.mxu0 0.0
      %587 = vmatpush2.msra.mxu0 0.0
      %588 = vmatprep.subr.mxu0 0.0
      %589 = vmatpush2.msra.mxu0 0.0
      %590 = vmatprep.subr.mxu0 0.0
      %591 = vmatpush2.msra.mxu0 0.0
      %592 = vmatprep.subr.mxu0 0.0
      %593 = vmatpush2.msra.mxu0 0.0
      %594 = vmatprep.subr.mxu0 0.0
      %595 = vmatpush2.msra.mxu0 0.0
      %596 = vmatprep.subr.mxu0 0.0
      %597 = vmatpush2.msra.mxu0 0.0
      %598 = vmatprep.subr.mxu0 0.0
      %599 = vmatpush2.msra.mxu0 0.0
      %600 = vmatprep.subr.mxu0 0.0
      %601 = vmatpush2.msra.mxu0 0.0
      %602 = vmatprep.subr.mxu0 0.0
      %603 = vmatpush2.msra.mxu0 0.0
      %604 = vmatprep.subr.mxu0 0.0
      %605 = vmatpush2.msra.mxu0 0.0
      %606 = vmatprep.subr.mxu0 0.0
      %607 = vmatpush2.msra.mxu0 0.0
      %608 = vmatprep.subr.mxu0 0.0
      %609 = vmatpush2.msra.mxu0 0.0
      %610 = vmatprep.mubr.f32.mxu0 0.0
      %611 = vmatmul.mubr.f32.gmra.mxu0 %v499
      %v612 = vpop.f32.mrf.mxu0
      %v613 = vadd.f32 %v481, %v612
      %v614 = vpop.f32.mrf.mxu0
      %615 = vmatprep.mubr.f32.mxu0 0.0
      %616 = vmatmul.mubr.f32.gmra.mxu0 %v502
      %v617 = vpop.f32.mrf.mxu0
      %v618 = vadd.f32 %v482, %v617
      %v619 = vpop.f32.mrf.mxu0
      %620 = vmatprep.mubr.f32.mxu0 0.0
      %621 = vmatmul.mubr.f32.gmra.mxu0 %v505
      %v622 = vpop.f32.mrf.mxu0
      %v623 = vadd.f32 %v483, %v622
      %v624 = vpop.f32.mrf.mxu0
      %625 = vmatprep.mubr.f32.mxu0 0.0
      %626 = vmatmul.mubr.f32.gmra.mxu0 %v508
      %v627 = vpop.f32.mrf.mxu0
      %v628 = vadd.f32 %v484, %v627
      %v629 = vpop.f32.mrf.mxu0
      %630 = vmatprep.mubr.f32.mxu0 0.0
      %631 = vmatmul.mubr.f32.gmra.mxu0 %v511
      %v632 = vpop.f32.mrf.mxu0
      %v633 = vadd.f32 %v485, %v632
      %v634 = vpop.f32.mrf.mxu0
      %635 = vmatprep.mubr.f32.mxu0 0.0
      %636 = vmatmul.mubr.f32.gmra.mxu0 %v514
      %v637 = vpop.f32.mrf.mxu0
      %v638 = vadd.f32 %v486, %v637
      %v639 = vpop.f32.mrf.mxu0
      %640 = vmatprep.mubr.f32.mxu0 0.0
      %641 = vmatmul.mubr.f32.gmra.mxu0 %v517
      %v642 = vpop.f32.mrf.mxu0
      %v643 = vadd.f32 %v487, %v642
      %v644 = vpop.f32.mrf.mxu0
      %645 = vmatprep.mubr.f32.mxu0 0.0
      %646 = vmatmul.mubr.f32.gmra.mxu0 %v520
      %v647 = vpop.f32.mrf.mxu0
      %v648 = vadd.f32 %v488, %v647
      %v649 = vpop.f32.mrf.mxu0
      %650 = vmatprep.mubr.f32.mxu0 0.0
      %651 = vmatmul.mubr.f32.gmra.mxu0 %v523
      %v652 = vpop.f32.mrf.mxu0
      %v653 = vadd.f32 %v489, %v652
      %v654 = vpop.f32.mrf.mxu0
      %655 = vmatprep.mubr.f32.mxu0 0.0
      %656 = vmatmul.mubr.f32.gmra.mxu0 %v526
      %v657 = vpop.f32.mrf.mxu0
      %v658 = vadd.f32 %v490, %v657
      %v659 = vpop.f32.mrf.mxu0
      %660 = vmatprep.mubr.f32.mxu0 0.0
      %661 = vmatmul.mubr.f32.gmra.mxu0 %v529
      %v662 = vpop.f32.mrf.mxu0
      %v663 = vadd.f32 %v491, %v662
      %v664 = vpop.f32.mrf.mxu0
      %665 = vmatprep.mubr.f32.mxu0 0.0
      %666 = vmatmul.mubr.f32.gmra.mxu0 %v532
      %v667 = vpop.f32.mrf.mxu0
      %v668 = vadd.f32 %v492, %v667
      %v669 = vpop.f32.mrf.mxu0
      %670 = vmatprep.mubr.f32.mxu0 0.0
      %671 = vmatmul.mubr.f32.gmra.mxu0 %v535
      %v672 = vpop.f32.mrf.mxu0
      %v673 = vadd.f32 %v493, %v672
      %v674 = vpop.f32.mrf.mxu0
      %675 = vmatprep.mubr.f32.mxu0 0.0
      %676 = vmatmul.mubr.f32.gmra.mxu0 %v538
      %v677 = vpop.f32.mrf.mxu0
      %v678 = vadd.f32 %v494, %v677
      %v679 = vpop.f32.mrf.mxu0
      %680 = vmatprep.mubr.f32.mxu0 0.0
      %681 = vmatmul.mubr.f32.gmra.mxu0 %v541
      %v682 = vpop.f32.mrf.mxu0
      %v683 = vadd.f32 %v495, %v682
      %v684 = vpop.f32.mrf.mxu0
      %685 = vmatprep.mubr.f32.mxu0 0.0
      %686 = vmatmul.mubr.f32.gmra.mxu0 %v544
      %v687 = vpop.f32.mrf.mxu0
      %v688 = vadd.f32 %v496, %v687
      %v689 = vpop.f32.mrf.mxu0
      %690 = vdwg.mxu0
      %v691 = vld [vmem:[%s4] sm:$0x1]
      %v693 = vlaneseq
      %v694 = vshrl.u32 %v693, 7
      %v695 = vsub.s32 0, %v694
      %v696 = vrot.slane %v691, %v695
      %v698 = vadd.f32 %v613, %v696
      %v699 = vadd.f32 %v618, %v696
      %v700 = vadd.f32 %v623, %v696
      %v701 = vadd.f32 %v628, %v696
      %v702 = vadd.f32 %v633, %v696
      %v703 = vadd.f32 %v638, %v696
      %v704 = vadd.f32 %v643, %v696
      %v705 = vadd.f32 %v648, %v696
      %v706 = vadd.f32 %v653, %v696
      %v707 = vadd.f32 %v658, %v696
      %v708 = vadd.f32 %v663, %v696
      %v709 = vadd.f32 %v668, %v696
      %v710 = vadd.f32 %v673, %v696
      %v711 = vadd.f32 %v678, %v696
      %v712 = vadd.f32 %v683, %v696
      %v713 = vadd.f32 %v688, %v696
      %v714 = vmax.f32 %v698, 0.0
      %v715 = vmax.f32 %v699, 0.0
      %v716 = vmax.f32 %v700, 0.0
      %v717 = vmax.f32 %v701, 0.0
      %v718 = vmax.f32 %v702, 0.0
      %v719 = vmax.f32 %v703, 0.0
      %v720 = vmax.f32 %v704, 0.0
      %v721 = vmax.f32 %v705, 0.0
      %v722 = vmax.f32 %v706, 0.0
      %v723 = vmax.f32 %v707, 0.0
      %v724 = vmax.f32 %v708, 0.0
      %v725 = vmax.f32 %v709, 0.0
      %v726 = vmax.f32 %v710, 0.0
      %v727 = vmax.f32 %v711, 0.0
      %v728 = vmax.f32 %v712, 0.0
      %v729 = vmax.f32 %v713, 0.0
      %v730 = vld [vmem:[%s5] sm:$0xff]
      %v731 = vld [vmem:[%s5 + $0x8] sm:$0xff]
      %v732 = vld [vmem:[%s5 + $0x10] sm:$0xff]
      %v733 = vld [vmem:[%s5 + $0x18] sm:$0xff]
      %v734 = vld [vmem:[%s5 + $0x20] sm:$0xff]
      %v735 = vld [vmem:[%s5 + $0x28] sm:$0xff]
      %v736 = vld [vmem:[%s5 + $0x30] sm:$0xff]
      %v737 = vld [vmem:[%s5 + $0x38] sm:$0xff]
      %v738 = vld [vmem:[%s5 + $0x40] sm:$0xff]
      %v739 = vld [vmem:[%s5 + $0x48] sm:$0xff]
      %v740 = vld [vmem:[%s5 + $0x50] sm:$0xff]
      %v741 = vld [vmem:[%s5 + $0x58] sm:$0xff]
      %v742 = vld [vmem:[%s5 + $0x60] sm:$0xff]
      %v743 = vld [vmem:[%s5 + $0x68] sm:$0xff]
      %v744 = vld [vmem:[%s5 + $0x70] sm:$0xff]
      %v745 = vld [vmem:[%s5 + $0x78] sm:$0xff]
      %v746 = vld [vmem:[%s6] sm:$0x1]
      %v748 = vlaneseq
      %v749 = vshrl.u32 %v748, 7
      %v750 = vsub.s32 0, %v749
      %v751 = vrot.slane %v746, %v750
      %753 = vmatprep.subr.mxu0 0.0
      %754 = vmatpush1.msra.mxu0 %v745
      %755 = vmatprep.subr.mxu0 0.0
      %756 = vmatpush1.msra.mxu0 %v744
      %757 = vmatprep.subr.mxu0 0.0
      %758 = vmatpush1.msra.mxu0 %v743
      %759 = vmatprep.subr.mxu0 0.0
      %760 = vmatpush1.msra.mxu0 %v742
      %761 = vmatprep.subr.mxu0 0.0
      %762 = vmatpush1.msra.mxu0 %v741
      %763 = vmatprep.subr.mxu0 0.0
      %764 = vmatpush1.msra.mxu0 %v740
      %765 = vmatprep.subr.mxu0 0.0
      %766 = vmatpush1.msra.mxu0 %v739
      %767 = vmatprep.subr.mxu0 0.0
      %768 = vmatpush1.msra.mxu0 %v738
      %769 = vmatprep.subr.mxu0 0.0
      %770 = vmatpush1.msra.mxu0 %v737
      %771 = vmatprep.subr.mxu0 0.0
      %772 = vmatpush1.msra.mxu0 %v736
      %773 = vmatprep.subr.mxu0 0.0
      %774 = vmatpush1.msra.mxu0 %v735
      %775 = vmatprep.subr.mxu0 0.0
      %776 = vmatpush1.msra.mxu0 %v734
      %777 = vmatprep.subr.mxu0 0.0
      %778 = vmatpush1.msra.mxu0 %v733
      %779 = vmatprep.subr.mxu0 0.0
      %780 = vmatpush1.msra.mxu0 %v732
      %781 = vmatprep.subr.mxu0 0.0
      %782 = vmatpush1.msra.mxu0 %v731
      %783 = vmatprep.subr.mxu0 0.0
      %784 = vmatpush1.msra.mxu0 %v730
      %785 = vmatprep.subr.mxu0 0.0
      %786 = vmatpush2.msra.mxu0 0.0
      %787 = vmatprep.subr.mxu0 0.0
      %788 = vmatpush2.msra.mxu0 0.0
      %789 = vmatprep.subr.mxu0 0.0
      %790 = vmatpush2.msra.mxu0 0.0
      %791 = vmatprep.subr.mxu0 0.0
      %792 = vmatpush2.msra.mxu0 0.0
      %793 = vmatprep.subr.mxu0 0.0
      %794 = vmatpush2.msra.mxu0 0.0
      %795 = vmatprep.subr.mxu0 0.0
      %796 = vmatpush2.msra.mxu0 0.0
      %797 = vmatprep.subr.mxu0 0.0
      %798 = vmatpush2.msra.mxu0 0.0
      %799 = vmatprep.subr.mxu0 0.0
      %800 = vmatpush2.msra.mxu0 0.0
      %801 = vmatprep.subr.mxu0 0.0
      %802 = vmatpush2.msra.mxu0 0.0
      %803 = vmatprep.subr.mxu0 0.0
      %804 = vmatpush2.msra.mxu0 0.0
      %805 = vmatprep.subr.mxu0 0.0
      %806 = vmatpush2.msra.mxu0 0.0
      %807 = vmatprep.subr.mxu0 0.0
      %808 = vmatpush2.msra.mxu0 0.0
      %809 = vmatprep.subr.mxu0 0.0
      %810 = vmatpush2.msra.mxu0 0.0
      %811 = vmatprep.subr.mxu0 0.0
      %812 = vmatpush2.msra.mxu0 0.0
      %813 = vmatprep.subr.mxu0 0.0
      %814 = vmatpush2.msra.mxu0 0.0
      %815 = vmatprep.subr.mxu0 0.0
      %816 = vmatpush2.msra.mxu0 0.0
      %817 = vmatprep.mubr.f32.mxu0 0.0
      %818 = vmatmul.mubr.f32.gmra.mxu0 %v714
      %v819 = vpop.f32.mrf.mxu0
      %v820 = vadd.f32 %v751, %v819
      %v821 = vpop.f32.mrf.mxu0
      %822 = vmatprep.mubr.f32.mxu0 0.0
      %823 = vmatmul.mubr.f32.gmra.mxu0 %v715
      %v824 = vpop.f32.mrf.mxu0
      %v825 = vadd.f32 %v751, %v824
      %v826 = vpop.f32.mrf.mxu0
      %827 = vmatprep.mubr.f32.mxu0 0.0
      %828 = vmatmul.mubr.f32.gmra.mxu0 %v716
      %v829 = vpop.f32.mrf.mxu0
      %v830 = vadd.f32 %v751, %v829
      %v831 = vpop.f32.mrf.mxu0
      %832 = vmatprep.mubr.f32.mxu0 0.0
      %833 = vmatmul.mubr.f32.gmra.mxu0 %v717
      %v834 = vpop.f32.mrf.mxu0
      %v835 = vadd.f32 %v751, %v834
      %v836 = vpop.f32.mrf.mxu0
      %837 = vmatprep.mubr.f32.mxu0 0.0
      %838 = vmatmul.mubr.f32.gmra.mxu0 %v718
      %v839 = vpop.f32.mrf.mxu0
      %v840 = vadd.f32 %v751, %v839
      %v841 = vpop.f32.mrf.mxu0
      %842 = vmatprep.mubr.f32.mxu0 0.0
      %843 = vmatmul.mubr.f32.gmra.mxu0 %v719
      %v844 = vpop.f32.mrf.mxu0
      %v845 = vadd.f32 %v751, %v844
      %v846 = vpop.f32.mrf.mxu0
      %847 = vmatprep.mubr.f32.mxu0 0.0
      %848 = vmatmul.mubr.f32.gmra.mxu0 %v720
      %v849 = vpop.f32.mrf.mxu0
      %v850 = vadd.f32 %v751, %v849
      %v851 = vpop.f32.mrf.mxu0
      %852 = vmatprep.mubr.f32.mxu0 0.0
      %853 = vmatmul.mubr.f32.gmra.mxu0 %v721
      %v854 = vpop.f32.mrf.mxu0
      %v855 = vadd.f32 %v751, %v854
      %v856 = vpop.f32.mrf.mxu0
      %857 = vmatprep.mubr.f32.mxu0 0.0
      %858 = vmatmul.mubr.f32.gmra.mxu0 %v722
      %v859 = vpop.f32.mrf.mxu0
      %v860 = vadd.f32 %v751, %v859
      %v861 = vpop.f32.mrf.mxu0
      %862 = vmatprep.mubr.f32.mxu0 0.0
      %863 = vmatmul.mubr.f32.gmra.mxu0 %v723
      %v864 = vpop.f32.mrf.mxu0
      %v865 = vadd.f32 %v751, %v864
      %v866 = vpop.f32.mrf.mxu0
      %867 = vmatprep.mubr.f32.mxu0 0.0
      %868 = vmatmul.mubr.f32.gmra.mxu0 %v724
      %v869 = vpop.f32.mrf.mxu0
      %v870 = vadd.f32 %v751, %v869
      %v871 = vpop.f32.mrf.mxu0
      %872 = vmatprep.mubr.f32.mxu0 0.0
      %873 = vmatmul.mubr.f32.gmra.mxu0 %v725
      %v874 = vpop.f32.mrf.mxu0
      %v875 = vadd.f32 %v751, %v874
      %v876 = vpop.f32.mrf.mxu0
      %877 = vmatprep.mubr.f32.mxu0 0.0
      %878 = vmatmul.mubr.f32.gmra.mxu0 %v726
      %v879 = vpop.f32.mrf.mxu0
      %v880 = vadd.f32 %v751, %v879
      %v881 = vpop.f32.mrf.mxu0
      %882 = vmatprep.mubr.f32.mxu0 0.0
      %883 = vmatmul.mubr.f32.gmra.mxu0 %v727
      %v884 = vpop.f32.mrf.mxu0
      %v885 = vadd.f32 %v751, %v884
      %v886 = vpop.f32.mrf.mxu0
      %887 = vmatprep.mubr.f32.mxu0 0.0
      %888 = vmatmul.mubr.f32.gmra.mxu0 %v728
      %v889 = vpop.f32.mrf.mxu0
      %v890 = vadd.f32 %v751, %v889
      %v891 = vpop.f32.mrf.mxu0
      %892 = vmatprep.mubr.f32.mxu0 0.0
      %893 = vmatmul.mubr.f32.gmra.mxu0 %v729
      %v894 = vpop.f32.mrf.mxu0
      %v895 = vadd.f32 %v751, %v894
      %v896 = vpop.f32.mrf.mxu0
      %897 = vdwg.mxu0
      %v898 = vmax.f32 %v820, 0.0
      %v899 = vmax.f32 %v825, 0.0
      %v900 = vmax.f32 %v830, 0.0
      %v901 = vmax.f32 %v835, 0.0
      %v902 = vmax.f32 %v840, 0.0
      %v903 = vmax.f32 %v845, 0.0
      %v904 = vmax.f32 %v850, 0.0
      %v905 = vmax.f32 %v855, 0.0
      %v906 = vmax.f32 %v860, 0.0
      %v907 = vmax.f32 %v865, 0.0
      %v908 = vmax.f32 %v870, 0.0
      %v909 = vmax.f32 %v875, 0.0
      %v910 = vmax.f32 %v880, 0.0
      %v911 = vmax.f32 %v885, 0.0
      %v912 = vmax.f32 %v890, 0.0
      %v913 = vmax.f32 %v895, 0.0
      %v914 = vld [vmem:[%s7] sm:$0xff]
      %v915 = vld [vmem:[%s7 + $0x8] sm:$0xff]
      %v916 = vld [vmem:[%s7 + $0x10] sm:$0xff]
      %v917 = vld [vmem:[%s7 + $0x18] sm:$0xff]
      %v918 = vld [vmem:[%s7 + $0x20] sm:$0xff]
      %v919 = vld [vmem:[%s7 + $0x28] sm:$0xff]
      %v920 = vld [vmem:[%s7 + $0x30] sm:$0xff]
      %v921 = vld [vmem:[%s7 + $0x38] sm:$0xff]
      %v922 = vld [vmem:[%s7 + $0x40] sm:$0xff]
      %v923 = vld [vmem:[%s7 + $0x48] sm:$0xff]
      %v924 = vld [vmem:[%s7 + $0x50] sm:$0xff]
      %v925 = vld [vmem:[%s7 + $0x58] sm:$0xff]
      %v926 = vld [vmem:[%s7 + $0x60] sm:$0xff]
      %v927 = vld [vmem:[%s7 + $0x68] sm:$0xff]
      %v928 = vld [vmem:[%s7 + $0x70] sm:$0xff]
      %v929 = vld [vmem:[%s7 + $0x78] sm:$0xff]
      %v930 = vld [vmem:[%s8] sm:$0x1]
      %v932 = vlaneseq
      %v933 = vshrl.u32 %v932, 7
      %v934 = vsub.s32 0, %v933
      %v935 = vrot.slane %v930, %v934
      %937 = vmatprep.subr.mxu0 0.0
      %938 = vmatpush1.msra.mxu0 %v929
      %939 = vmatprep.subr.mxu0 0.0
      %940 = vmatpush1.msra.mxu0 %v928
      %941 = vmatprep.subr.mxu0 0.0
      %942 = vmatpush1.msra.mxu0 %v927
      %943 = vmatprep.subr.mxu0 0.0
      %944 = vmatpush1.msra.mxu0 %v926
      %945 = vmatprep.subr.mxu0 0.0
      %946 = vmatpush1.msra.mxu0 %v925
      %947 = vmatprep.subr.mxu0 0.0
      %948 = vmatpush1.msra.mxu0 %v924
      %949 = vmatprep.subr.mxu0 0.0
      %950 = vmatpush1.msra.mxu0 %v923
      %951 = vmatprep.subr.mxu0 0.0
      %952 = vmatpush1.msra.mxu0 %v922
      %953 = vmatprep.subr.mxu0 0.0
      %954 = vmatpush1.msra.mxu0 %v921
      %955 = vmatprep.subr.mxu0 0.0
      %956 = vmatpush1.msra.mxu0 %v920
      %957 = vmatprep.subr.mxu0 0.0
      %958 = vmatpush1.msra.mxu0 %v919
      %959 = vmatprep.subr.mxu0 0.0
      %960 = vmatpush1.msra.mxu0 %v918
      %961 = vmatprep.subr.mxu0 0.0
      %962 = vmatpush1.msra.mxu0 %v917
      %963 = vmatprep.subr.mxu0 0.0
      %964 = vmatpush1.msra.mxu0 %v916
      %965 = vmatprep.subr.mxu0 0.0
      %966 = vmatpush1.msra.mxu0 %v915
      %967 = vmatprep.subr.mxu0 0.0
      %968 = vmatpush1.msra.mxu0 %v914
      %969 = vmatprep.subr.mxu0 0.0
      %970 = vmatpush2.msra.mxu0 0.0
      %971 = vmatprep.subr.mxu0 0.0
      %972 = vmatpush2.msra.mxu0 0.0
      %973 = vmatprep.subr.mxu0 0.0
      %974 = vmatpush2.msra.mxu0 0.0
      %975 = vmatprep.subr.mxu0 0.0
      %976 = vmatpush2.msra.mxu0 0.0
      %977 = vmatprep.subr.mxu0 0.0
      %978 = vmatpush2.msra.mxu0 0.0
      %979 = vmatprep.subr.mxu0 0.0
      %980 = vmatpush2.msra.mxu0 0.0
      %981 = vmatprep.subr.mxu0 0.0
      %982 = vmatpush2.msra.mxu0 0.0
      %983 = vmatprep.subr.mxu0 0.0
      %984 = vmatpush2.msra.mxu0 0.0
      %985 = vmatprep.subr.mxu0 0.0
      %986 = vmatpush2.msra.mxu0 0.0
      %987 = vmatprep.subr.mxu0 0.0
      %988 = vmatpush2.msra.mxu0 0.0
      %989 = vmatprep.subr.mxu0 0.0
      %990 = vmatpush2.msra.mxu0 0.0
      %991 = vmatprep.subr.mxu0 0.0
      %992 = vmatpush2.msra.mxu0 0.0
      %993 = vmatprep.subr.mxu0 0.0
      %994 = vmatpush2.msra.mxu0 0.0
      %995 = vmatprep.subr.mxu0 0.0
      %996 = vmatpush2.msra.mxu0 0.0
      %997 = vmatprep.subr.mxu0 0.0
      %998 = vmatpush2.msra.mxu0 0.0
      %999 = vmatprep.subr.mxu0 0.0
      %1000 = vmatpush2.msra.mxu0 0.0
      %1001 = vmatprep.mubr.f32.mxu0 0.0
      %1002 = vmatmul.mubr.f32.gmra.mxu0 %v898
      %v1003 = vpop.f32.mrf.mxu0
      %v1004 = vadd.f32 %v935, %v1003
      %v1005 = vpop.f32.mrf.mxu0
      %1006 = vmatprep.mubr.f32.mxu0 0.0
      %1007 = vmatmul.mubr.f32.gmra.mxu0 %v899
      %v1008 = vpop.f32.mrf.mxu0
      %v1009 = vadd.f32 %v935, %v1008
      %v1010 = vpop.f32.mrf.mxu0
      %1011 = vmatprep.mubr.f32.mxu0 0.0
      %1012 = vmatmul.mubr.f32.gmra.mxu0 %v900
      %v1013 = vpop.f32.mrf.mxu0
      %v1014 = vadd.f32 %v935, %v1013
      %v1015 = vpop.f32.mrf.mxu0
      %1016 = vmatprep.mubr.f32.mxu0 0.0
      %1017 = vmatmul.mubr.f32.gmra.mxu0 %v901
      %v1018 = vpop.f32.mrf.mxu0
      %v1019 = vadd.f32 %v935, %v1018
      %v1020 = vpop.f32.mrf.mxu0
      %1021 = vmatprep.mubr.f32.mxu0 0.0
      %1022 = vmatmul.mubr.f32.gmra.mxu0 %v902
      %v1023 = vpop.f32.mrf.mxu0
      %v1024 = vadd.f32 %v935, %v1023
      %v1025 = vpop.f32.mrf.mxu0
      %1026 = vmatprep.mubr.f32.mxu0 0.0
      %1027 = vmatmul.mubr.f32.gmra.mxu0 %v903
      %v1028 = vpop.f32.mrf.mxu0
      %v1029 = vadd.f32 %v935, %v1028
      %v1030 = vpop.f32.mrf.mxu0
      %1031 = vmatprep.mubr.f32.mxu0 0.0
      %1032 = vmatmul.mubr.f32.gmra.mxu0 %v904
      %v1033 = vpop.f32.mrf.mxu0
      %v1034 = vadd.f32 %v935, %v1033
      %v1035 = vpop.f32.mrf.mxu0
      %1036 = vmatprep.mubr.f32.mxu0 0.0
      %1037 = vmatmul.mubr.f32.gmra.mxu0 %v905
      %v1038 = vpop.f32.mrf.mxu0
      %v1039 = vadd.f32 %v935, %v1038
      %v1040 = vpop.f32.mrf.mxu0
      %1041 = vmatprep.mubr.f32.mxu0 0.0
      %1042 = vmatmul.mubr.f32.gmra.mxu0 %v906
      %v1043 = vpop.f32.mrf.mxu0
      %v1044 = vadd.f32 %v935, %v1043
      %v1045 = vpop.f32.mrf.mxu0
      %1046 = vmatprep.mubr.f32.mxu0 0.0
      %1047 = vmatmul.mubr.f32.gmra.mxu0 %v907
      %v1048 = vpop.f32.mrf.mxu0
      %v1049 = vadd.f32 %v935, %v1048
      %v1050 = vpop.f32.mrf.mxu0
      %1051 = vmatprep.mubr.f32.mxu0 0.0
      %1052 = vmatmul.mubr.f32.gmra.mxu0 %v908
      %v1053 = vpop.f32.mrf.mxu0
      %v1054 = vadd.f32 %v935, %v1053
      %v1055 = vpop.f32.mrf.mxu0
      %1056 = vmatprep.mubr.f32.mxu0 0.0
      %1057 = vmatmul.mubr.f32.gmra.mxu0 %v909
      %v1058 = vpop.f32.mrf.mxu0
      %v1059 = vadd.f32 %v935, %v1058
      %v1060 = vpop.f32.mrf.mxu0
      %1061 = vmatprep.mubr.f32.mxu0 0.0
      %1062 = vmatmul.mubr.f32.gmra.mxu0 %v910
      %v1063 = vpop.f32.mrf.mxu0
      %v1064 = vadd.f32 %v935, %v1063
      %v1065 = vpop.f32.mrf.mxu0
      %1066 = vmatprep.mubr.f32.mxu0 0.0
      %1067 = vmatmul.mubr.f32.gmra.mxu0 %v911
      %v1068 = vpop.f32.mrf.mxu0
      %v1069 = vadd.f32 %v935, %v1068
      %v1070 = vpop.f32.mrf.mxu0
      %1071 = vmatprep.mubr.f32.mxu0 0.0
      %1072 = vmatmul.mubr.f32.gmra.mxu0 %v912
      %v1073 = vpop.f32.mrf.mxu0
      %v1074 = vadd.f32 %v935, %v1073
      %v1075 = vpop.f32.mrf.mxu0
      %1076 = vmatprep.mubr.f32.mxu0 0.0
      %1077 = vmatmul.mubr.f32.gmra.mxu0 %v913
      %v1078 = vpop.f32.mrf.mxu0
      %v1079 = vadd.f32 %v935, %v1078
      %v1080 = vpop.f32.mrf.mxu0
      %1081 = vdwg.mxu0
      %1082 = vst [vmem:[%s356] sm:$0xff] %v1004
      %1083 = vst [vmem:[%s356 + $0x8] sm:$0xff] %v1009
      %1084 = vst [vmem:[%s356 + $0x10] sm:$0xff] %v1014
      %1085 = vst [vmem:[%s356 + $0x18] sm:$0xff] %v1019
      %1086 = vst [vmem:[%s356 + $0x20] sm:$0xff] %v1024
      %1087 = vst [vmem:[%s356 + $0x28] sm:$0xff] %v1029
      %1088 = vst [vmem:[%s356 + $0x30] sm:$0xff] %v1034
      %1089 = vst [vmem:[%s356 + $0x38] sm:$0xff] %v1039
      %1090 = vst [vmem:[%s356 + $0x40] sm:$0xff] %v1044
      %1091 = vst [vmem:[%s356 + $0x48] sm:$0xff] %v1049
      %1092 = vst [vmem:[%s356 + $0x50] sm:$0xff] %v1054
      %1093 = vst [vmem:[%s356 + $0x58] sm:$0xff] %v1059
      %1094 = vst [vmem:[%s356 + $0x60] sm:$0xff] %v1064
      %1095 = vst [vmem:[%s356 + $0x68] sm:$0xff] %v1069
      %1096 = vst [vmem:[%s356 + $0x70] sm:$0xff] %v1074
      %1097 = vst [vmem:[%s356 + $0x78] sm:$0xff] %v1079
      %s1098 = smul.u32 16, %s20
      %p1099 = scmp.lt.s32.totalorder %s1098, 31
      %s1100 = scalar_select %p1099, %s1098, 31
      %s1101 = smul.addr %s1100, 8
      %s1102 = scalar_lea.vmem %s9, %s1101
      // Predicated region
      $region57: #{dynamics_forward.1} parent=55 // pred_check
        %p1103 = pneg %p237
      $region58: #{dynamics_forward.1} parent=55 // pred_check_branch
        %1105 = sbr.rel (%p1103) target = $region60
      $region59: #{dynamics_forward.1} parent=55 // pred_region
        %s1106 = smul.u32 16, %s20
      $region60: #{dynamics_forward.1} parent=55 // pred_fallthru
        _
    $region56: #{dynamics_forward.1} parent=5 // pred_fallthru
      _
    %p1107 = scmp.le.s32.totalorder 2, %s15
    // Predicated region
    $region61: #{dynamics_forward.1} parent=5 // pred_check
      %p1108 = pneg %p1107
    $region62: #{dynamics_forward.1} parent=5 // pred_check_branch
      %1110 = sbr.rel (%p1108) target = $region64
    $region63: #{dynamics_forward.1} parent=5 // pred_region
      %s1111 = ssub.s32 %s15, 2
      // Predicated region
      $region65: #{dynamics_forward.1} parent=63 // pred_check
        %p1112 = pneg %p243
      $region66: #{dynamics_forward.1} parent=63 // pred_check_branch
        %1114 = sbr.rel (%p1112) target = $region68
      $region67: #{dynamics_forward.1} parent=63 // pred_region
        %s1115 = smul.u32 16, %s21
        %p1116 = scmp.lt.s32.totalorder %s1115, 31
        %s1117 = scalar_select %p1116, %s1115, 31
        %s1118 = smul.addr %s1117, 8
        %s1119 = scalar_lea.vmem %s9, %s1118
      $region68: #{dynamics_forward.1} parent=63 // pred_fallthru
        _
    $region64: #{dynamics_forward.1} parent=5 // pred_fallthru
      _
  $region6: #{dynamics_forward.1} parent=0 // loop_footer
    %s19 = sadd.s32 1, %s15
  $region7: #{dynamics_forward.1} parent=0 // loop_footer_branch
    %14 = sbr.rel target = $region3
  $region8: #{dynamics_forward.1} parent=0 // loop_exit
    _

</llo_original>
